<compile_context>
chip_gen: v7x
topology: tpu7x:2x2x1
jax: 0.10.0
libtpu: 0.0.40
codegen_flags: <defaults>
</compile_context>

<pallas_src>
import jax
import jax.numpy as jnp
from jax.experimental import pallas as pl
from jax.experimental.pallas import tpu as pltpu


_NCORES = 2                      # leading "parallel" grid axis (v7x megacore); harmless on 1-TC chips
_BLOCK_BYTES = 2 * 1024 * 1024   # target VMEM bytes per input block (per pipeline buffer)
_VMEM_LIMIT = 48 * 1024 * 1024   # leaves headroom inside v7x's 64 MiB physical VMEM


def _round_up(x, m):
    return (x + m - 1) // m * m


def _cdiv(a, b):
    return (a + b - 1) // b


def _tv_kernel(o_ref, g_ref, sx_ref, sy_ref, accx_ref, accy_ref):
    # o_ref / g_ref   : (TB, H, W) VMEM tiles of the current slab chunk.
    # sx_ref / sy_ref : (1, 1, 1) per-core partial sums (written once, in the epilogue).
    # accx_ref        : (H, W-1) f32 scratch accumulator (persists across grid steps).
    # accy_ref        : (H-1, W) f32 scratch accumulator.
    j = pl.program_id(1)

    @pl.when(j == 0)
    def _init():
        accx_ref[...] = jnp.zeros_like(accx_ref)
        accy_ref[...] = jnp.zeros_like(accy_ref)

    # |grad(out) - grad(gt)| == |grad(out - gt)|  ->  one subtract, two diffs.
    d = o_ref[...].astype(jnp.float32) - g_ref[...].astype(jnp.float32)   # (TB, H, W)

    ax = jnp.abs(d[:, :, 1:] - d[:, :, :-1])    # (TB, H, W-1)   x-gradient diff
    ay = jnp.abs(d[:, 1:, :] - d[:, :-1, :])    # (TB, H-1, W)   y-gradient diff

    # Per step: reduce only the cheap leading TB axis (elementwise VPU adds).
    accx_ref[...] += jnp.sum(ax, axis=0)
    accy_ref[...] += jnp.sum(ay, axis=0)

    # One-time epilogue: full cross-lane/sublane reduction + per-core output write.
    @pl.when(j == pl.num_programs(1) - 1)
    def _finalize():
        sx_ref[...] = jnp.full(sx_ref.shape, jnp.sum(accx_ref[...]), jnp.float32)
        sy_ref[...] = jnp.full(sy_ref.shape, jnp.sum(accy_ref[...]), jnp.float32)


def tv_loss(out, gt, weight=1.0):
    """TV loss: weight * (L1_mean(dx(out), dx(gt)) + L1_mean(dy(out), dy(gt)))."""
    assert out.shape == gt.shape
    N, C, H, W = out.shape
    assert H >= 2 and W >= 2, "TVLoss needs H >= 2 and W >= 2"

    nc = N * C
    out_r = out.reshape(nc, H, W)
    gt_r = gt.reshape(nc, H, W)

    # ---- pick TB (slabs per grid step) from the VMEM budget -----------------
    # VMEM blocks are stored in (8, 128) tiles, so one (TB, H, W) f32 slab
    # really occupies roundup(H,8) * roundup(W,128) * 4 bytes.
    # TODO(synk): for W < 128, fold rows into the lane axis for a lane-dense
    # layout instead of relying on Mosaic's lane padding.
    slab_vmem_bytes = _round_up(H, 8) * _round_up(W, 128) * 4
    per_core = _cdiv(nc, _NCORES)
    tb = max(1, min(per_core, _BLOCK_BYTES // slab_vmem_bytes))
    steps = _cdiv(per_core, tb)
    nc_pad = _NCORES * steps * tb

    if nc_pad != nc:
        pad = nc_pad - nc
        # Zero slabs contribute exactly 0 to both partial sums (d == 0 there).
        out_r = jnp.concatenate([out_r, jnp.zeros((pad, H, W), out_r.dtype)], axis=0)
        gt_r = jnp.concatenate([gt_r, jnp.zeros((pad, H, W), gt_r.dtype)], axis=0)

    sx, sy = pl.pallas_call(
        _tv_kernel,
        out_shape=(
            jax.ShapeDtypeStruct((_NCORES, 1, 1), jnp.float32),
            jax.ShapeDtypeStruct((_NCORES, 1, 1), jnp.float32),
        ),
        grid_spec=pltpu.PrefetchScalarGridSpec(
            num_scalar_prefetch=0,
            grid=(_NCORES, steps),
            in_specs=[
                pl.BlockSpec((tb, H, W), lambda c, j: (c * steps + j, 0, 0)),
                pl.BlockSpec((tb, H, W), lambda c, j: (c * steps + j, 0, 0)),
            ],
            out_specs=[
                pl.BlockSpec((1, 1, 1), lambda c, j: (c, 0, 0)),
                pl.BlockSpec((1, 1, 1), lambda c, j: (c, 0, 0)),
            ],
            scratch_shapes=[
                pltpu.VMEM((H, W - 1), jnp.float32),
                pltpu.VMEM((H - 1, W), jnp.float32),
            ],
        ),
        compiler_params=pltpu.CompilerParams(
            dimension_semantics=("parallel", "arbitrary"),
            vmem_limit_bytes=_VMEM_LIMIT,
        ),
    )(out_r, gt_r)

    # Use the *true* counts (padded slabs contributed 0 to the sums).
    n_x = nc * H * (W - 1)
    n_y = nc * (H - 1) * W
    loss_x = jnp.sum(sx) / n_x
    loss_y = jnp.sum(sy) / n_y
    return weight * (loss_x + loss_y)


def tv_loss_ref(out, gt, weight=1.0):
    """Pure-JAX reference matching the PyTorch forward."""
    gox = out[:, :, :, 1:] - out[:, :, :, :-1]
    goy = out[:, :, 1:, :] - out[:, :, :-1, :]
    ggx = gt[:, :, :, 1:] - gt[:, :, :, :-1]
    ggy = gt[:, :, 1:, :] - gt[:, :, :-1, :]
    loss_x = jnp.mean(jnp.abs(gox - ggx))
    loss_y = jnp.mean(jnp.abs(goy - ggy))
    return weight * (loss_x + loss_y)


if __name__ == "__main__":
    key = jax.random.PRNGKey(0)
    k1, k2 = jax.random.split(key)
    N, C, H, W = 2, 4, 16, 16
    out = jax.random.normal(k1, (N, C, H, W), dtype=jnp.float32)
    gt = jax.random.normal(k2, (N, C, H, W), dtype=jnp.float32)

    loss = tv_loss(out, gt, weight=1.0)
    jax.block_until_ready(loss)

    ref = tv_loss_ref(out, gt, weight=1.0)
    assert jnp.allclose(loss, ref, atol=1e-5, rtol=1e-5), (loss, ref)

    print("KERNEL_OK")
</pallas_src>

<mosaic_0001>
module attributes {stable_mosaic.version = 11 : i64} {
  func.func @_tv_kernel(%arg0: i32, %arg1: i32, %arg2: memref<4x16x16xf32, #tpu.memory_space<vmem>>, %arg3: memref<4x16x16xf32, #tpu.memory_space<vmem>>, %arg4: memref<1x1x1xf32, #tpu.memory_space<vmem>>, %arg5: memref<1x1x1xf32, #tpu.memory_space<vmem>>, %arg6: memref<16x15xf32, #tpu.memory_space<vmem>>, %arg7: memref<15x16xf32, #tpu.memory_space<vmem>>) attributes {dimension_semantics = [#tpu.dimension_semantics<parallel>, #tpu.dimension_semantics<arbitrary>], iteration_bounds = array<i64: 2, 1>, scalar_prefetch = 0 : i64, scratch_operands = 2 : i64, tpu.core_type = #tpu.core_type<tc>, window_params = [{transform_indices = @transform_0, window_bounds = array<i64: 4, 16, 16>}, {transform_indices = @transform_1, window_bounds = array<i64: 4, 16, 16>}, {transform_indices = @transform_2, window_bounds = array<i64: 1, 1, 1>}, {transform_indices = @transform_3, window_bounds = array<i64: 1, 1, 1>}]} {
    %c0_i32 = arith.constant 0 : i32
    %0 = arith.cmpi eq, %arg1, %c0_i32 : i32
    %1 = arith.extui %0 : i1 to i32
    %c0_i32_0 = arith.constant 0 : i32
    %2 = arith.cmpi ne, %1, %c0_i32_0 : i32
    scf.if %2 {
      %cst_17 = arith.constant 0.000000e+00 : f32
      %25 = vector.broadcast %cst_17 : f32 to vector<16x15xf32>
      %c0_18 = arith.constant 0 : index
      %c0_19 = arith.constant 0 : index
      %26 = vector.load %arg6[%c0_18, %c0_19] : memref<16x15xf32, #tpu.memory_space<vmem>>, vector<16x15xf32>
      tpu.vector_store %arg6[%c0_18, %c0_19], %25 {strides = array<i32>} : memref<16x15xf32, #tpu.memory_space<vmem>>, vector<16x15xf32>,
      %cst_20 = arith.constant 0.000000e+00 : f32
      %27 = vector.broadcast %cst_20 : f32 to vector<15x16xf32>
      %c0_21 = arith.constant 0 : index
      %c0_22 = arith.constant 0 : index
      %28 = vector.load %arg7[%c0_21, %c0_22] : memref<15x16xf32, #tpu.memory_space<vmem>>, vector<15x16xf32>
      tpu.vector_store %arg7[%c0_21, %c0_22], %27 {strides = array<i32>} : memref<15x16xf32, #tpu.memory_space<vmem>>, vector<15x16xf32>,
    } else {
    }
    %c0 = arith.constant 0 : index
    %c0_1 = arith.constant 0 : index
    %c0_2 = arith.constant 0 : index
    %3 = vector.load %arg2[%c0, %c0_1, %c0_2] : memref<4x16x16xf32, #tpu.memory_space<vmem>>, vector<4x16x16xf32>
    %c0_3 = arith.constant 0 : index
    %c0_4 = arith.constant 0 : index
    %c0_5 = arith.constant 0 : index
    %4 = vector.load %arg3[%c0_3, %c0_4, %c0_5] : memref<4x16x16xf32, #tpu.memory_space<vmem>>, vector<4x16x16xf32>
    %5 = arith.subf %3, %4 : vector<4x16x16xf32>
    %6 = vector.extract_strided_slice %5 {offsets = [0, 0, 1], sizes = [4, 16, 15], strides = [1, 1, 1]} : vector<4x16x16xf32> to vector<4x16x15xf32>
    %7 = vector.extract_strided_slice %5 {offsets = [0, 0, 0], sizes = [4, 16, 15], strides = [1, 1, 1]} : vector<4x16x16xf32> to vector<4x16x15xf32>
    %8 = arith.subf %6, %7 : vector<4x16x15xf32>
    %9 = math.absf %8 : vector<4x16x15xf32>
    %10 = vector.extract_strided_slice %5 {offsets = [0, 1, 0], sizes = [4, 15, 16], strides = [1, 1, 1]} : vector<4x16x16xf32> to vector<4x15x16xf32>
    %11 = vector.extract_strided_slice %5 {offsets = [0, 0, 0], sizes = [4, 15, 16], strides = [1, 1, 1]} : vector<4x16x16xf32> to vector<4x15x16xf32>
    %12 = arith.subf %10, %11 : vector<4x15x16xf32>
    %13 = math.absf %12 : vector<4x15x16xf32>
    %c0_6 = arith.constant 0 : index
    %c0_7 = arith.constant 0 : index
    %14 = vector.load %arg6[%c0_6, %c0_7] : memref<16x15xf32, #tpu.memory_space<vmem>>, vector<16x15xf32>
    %cst = arith.constant dense<0.000000e+00> : vector<16x15xf32>
    %15 = vector.multi_reduction <add>, %9, %cst [0] : vector<4x16x15xf32> to vector<16x15xf32>
    %16 = arith.addf %14, %15 : vector<16x15xf32>
    %c0_8 = arith.constant 0 : index
    %c0_9 = arith.constant 0 : index
    %17 = vector.load %arg6[%c0_8, %c0_9] : memref<16x15xf32, #tpu.memory_space<vmem>>, vector<16x15xf32>
    tpu.vector_store %arg6[%c0_8, %c0_9], %16 {strides = array<i32>} : memref<16x15xf32, #tpu.memory_space<vmem>>, vector<16x15xf32>,
    %c0_10 = arith.constant 0 : index
    %c0_11 = arith.constant 0 : index
    %18 = vector.load %arg7[%c0_10, %c0_11] : memref<15x16xf32, #tpu.memory_space<vmem>>, vector<15x16xf32>
    %cst_12 = arith.constant dense<0.000000e+00> : vector<15x16xf32>
    %19 = vector.multi_reduction <add>, %13, %cst_12 [0] : vector<4x15x16xf32> to vector<15x16xf32>
    %20 = arith.addf %18, %19 : vector<15x16xf32>
    %c0_13 = arith.constant 0 : index
    %c0_14 = arith.constant 0 : index
    %21 = vector.load %arg7[%c0_13, %c0_14] : memref<15x16xf32, #tpu.memory_space<vmem>>, vector<15x16xf32>
    tpu.vector_store %arg7[%c0_13, %c0_14], %20 {strides = array<i32>} : memref<15x16xf32, #tpu.memory_space<vmem>>, vector<15x16xf32>,
    %c0_i32_15 = arith.constant 0 : i32
    %22 = arith.cmpi eq, %arg1, %c0_i32_15 : i32
    %23 = arith.extui %22 : i1 to i32
    %c0_i32_16 = arith.constant 0 : i32
    %24 = arith.cmpi ne, %23, %c0_i32_16 : i32
    scf.if %24 {
      %c0_17 = arith.constant 0 : index
      %c0_18 = arith.constant 0 : index
      %25 = vector.load %arg6[%c0_17, %c0_18] : memref<16x15xf32, #tpu.memory_space<vmem>>, vector<16x15xf32>
      %26 = vector.shape_cast %25 : vector<16x15xf32> to vector<1x16x15xf32>
      %cst_19 = arith.constant dense<0.000000e+00> : vector<1xf32>
      %27 = vector.multi_reduction <add>, %26, %cst_19 [1, 2] : vector<1x16x15xf32> to vector<1xf32>
      %28 = vector.shape_cast %27 : vector<1xf32> to vector<1x1x1xf32>
      %29 = vector.extract %28[0, 0, 0] : f32 from vector<1x1x1xf32>
      %30 = vector.broadcast %29 : f32 to vector<1x1x1xf32>
      %c0_20 = arith.constant 0 : index
      %c0_21 = arith.constant 0 : index
      %c0_22 = arith.constant 0 : index
      %31 = vector.load %arg4[%c0_20, %c0_21, %c0_22] : memref<1x1x1xf32, #tpu.memory_space<vmem>>, vector<1x1x1xf32>
      tpu.vector_store %arg4[%c0_20, %c0_21, %c0_22], %30 {strides = array<i32>} : memref<1x1x1xf32, #tpu.memory_space<vmem>>, vector<1x1x1xf32>,
      %c0_23 = arith.constant 0 : index
      %c0_24 = arith.constant 0 : index
      %32 = vector.load %arg7[%c0_23, %c0_24] : memref<15x16xf32, #tpu.memory_space<vmem>>, vector<15x16xf32>
      %33 = vector.shape_cast %32 : vector<15x16xf32> to vector<1x15x16xf32>
      %cst_25 = arith.constant dense<0.000000e+00> : vector<1xf32>
      %34 = vector.multi_reduction <add>, %33, %cst_25 [1, 2] : vector<1x15x16xf32> to vector<1xf32>
      %35 = vector.shape_cast %34 : vector<1xf32> to vector<1x1x1xf32>
      %36 = vector.extract %35[0, 0, 0] : f32 from vector<1x1x1xf32>
      %37 = vector.broadcast %36 : f32 to vector<1x1x1xf32>
      %c0_26 = arith.constant 0 : index
      %c0_27 = arith.constant 0 : index
      %c0_28 = arith.constant 0 : index
      %38 = vector.load %arg5[%c0_26, %c0_27, %c0_28] : memref<1x1x1xf32, #tpu.memory_space<vmem>>, vector<1x1x1xf32>
      tpu.vector_store %arg5[%c0_26, %c0_27, %c0_28], %37 {strides = array<i32>} : memref<1x1x1xf32, #tpu.memory_space<vmem>>, vector<1x1x1xf32>,
    } else {
    }
    return
  }
  func.func @transform_0(%arg0: i32, %arg1: i32) -> (i32, i32, i32) {
    %c1_i32 = arith.constant 1 : i32
    %0 = arith.muli %arg0, %c1_i32 : i32
    %1 = arith.addi %0, %arg1 : i32
    %c0_i32 = arith.constant 0 : i32
    %c0_i32_0 = arith.constant 0 : i32
    %c0_i32_1 = arith.constant 0 : i32
    return %1, %c0_i32, %c0_i32_0 : i32, i32, i32
  }
  func.func @transform_1(%arg0: i32, %arg1: i32) -> (i32, i32, i32) {
    %c1_i32 = arith.constant 1 : i32
    %0 = arith.muli %arg0, %c1_i32 : i32
    %1 = arith.addi %0, %arg1 : i32
    %c0_i32 = arith.constant 0 : i32
    %c0_i32_0 = arith.constant 0 : i32
    %c0_i32_1 = arith.constant 0 : i32
    return %1, %c0_i32, %c0_i32_0 : i32, i32, i32
  }
  func.func @transform_2(%arg0: i32, %arg1: i32) -> (i32, i32, i32) {
    %c0_i32 = arith.constant 0 : i32
    %c0_i32_0 = arith.constant 0 : i32
    %c0_i32_1 = arith.constant 0 : i32
    return %arg0, %c0_i32, %c0_i32_0 : i32, i32, i32
  }
  func.func @transform_3(%arg0: i32, %arg1: i32) -> (i32, i32, i32) {
    %c0_i32 = arith.constant 0 : i32
    %c0_i32_0 = arith.constant 0 : i32
    %c0_i32_1 = arith.constant 0 : i32
    return %arg0, %c0_i32, %c0_i32_0 : i32, i32, i32
  }
}

</mosaic_0001>

<llo_original>
// kernel: tpu_custom_call.1
$region0: #{tpu_custom_call.1}
  #allocation0 [shape = 'u32[]', space=smem, size = 0x4, offset = 0x4, fixed_abs, tag = 'smem constant byte address 0x4 - core index']
  #allocation1 [shape = 'u32[144,128]{1,0:T(1,128)}', space=vmem, size = 0x12000, scoped, tag = 'internal scratch']
  #allocation2 [shape = 'f32[16,15]{1,0:T(8,128)}', space=vmem, size = 0x2000, scoped, tag = 'scratch operand']
  #allocation3 [shape = 'f32[15,16]{1,0:T(8,128)}', space=vmem, size = 0x2000, scoped, tag = 'scratch operand']
  %s0 = inlined_call_operand.hbm [shape: f32[8,16,16], index: 0, kind: input, shape index: {}]
  %s1 = inlined_call_operand.hbm [shape: f32[8,16,16], index: 1, kind: input, shape index: {}]
  %s2 = inlined_call_operand.vmem [shape: f32[2,1,1], index: 2, kind: output, shape index: {0}]
  %s3 = inlined_call_operand.vmem [shape: f32[2,1,1], index: 3, kind: output, shape index: {1}]
  %4 = xla_tuple %s2, %s3
  %s5 = sld [smem:[#allocation0]]
  $region65: #{tpu_custom_call.1} parent=0
    _
  %s7 = ssub.s32 1, %s5
  %s8 = scalar_select 0, %s7, %s5
  $region1: #{tpu_custom_call.1} parent=0
    #allocation4 [shape = 'u8[65536]{0}', space=vmem, size = 0x10000, scoped, tag = 'input window, operand 0']
    #allocation5 [shape = 's32[2]{0}', space=sflag, size = 0x8, scoped, tag = 'scoped memory for tpu_custom_call.1']
    #allocation6 [shape = 'u8[65536]{0}', space=vmem, size = 0x10000, scoped, tag = 'input window, operand 1']
    #allocation7 [shape = 's32[2]{0}', space=sflag, size = 0x8, scoped, tag = 'scoped memory for tpu_custom_call.1']
    %9 = vsyncpa [#allocation5], 0
    %s10 = scalar_lea.sflag [#allocation5], 1
    %11 = vsyncpa %s10, 0
    %12 = vsyncpa [#allocation7], 0
    %s13 = scalar_lea.sflag [#allocation7], 1
    %14 = vsyncpa %s13, 0
    loop: start=0, step=1, limit=4
    $region2: #{tpu_custom_call.1} parent=1 // loop_pre_header
      _
    $region3: #{tpu_custom_call.1} parent=1 // loop_header
      %s16 = sphi 0, %s20
      %p17 = scmp.ge.s32.totalorder %s16, 4
      %s23 = sphi 0, %s35
      %s24 = sphi 0, %s31
      %s25 = sphi 0, %s23
      %s26 = sphi 0, %s24
      %s27 = sphi 0, %s25
      %s28 = sphi 0, %s26
      %s40 = sphi 0, %s42
      %s43 = sphi 0, %s40
      %s44 = sphi 0, %s43
      %s60 = sphi 0, %s44
      %s68 = sphi 0, %s70
      %s71 = sphi 0, %s68
      %s72 = sphi 0, %s71
      %s88 = sphi 0, %s72
      %s94 = sphi 0, %s96
      %s97 = sphi 0, %s94
      %s98 = sphi 0, %s97
      %s114 = sphi 0, %s98
      %s120 = sphi 0, %s122
      %s123 = sphi 0, %s120
      %s124 = sphi 0, %s123
      %s140 = sphi 0, %s124
    $region4: #{tpu_custom_call.1} parent=1 // loop_header_branch
      %19 = sbr.rel (%p17) target = $region8
    $region5: #{tpu_custom_call.1} parent=1 // loop_body
      %s21 = ssub.s32 %s16, 1
      %s22 = ssub.s32 %s16, 2
      %s29 = sadd.s32 1, %s24
      %p30 = scmp.ge.s32.totalorder %s29, 1
      %s31 = scalar_select %p30, 0, %s29
      %s32 = sadd.s32 1, %s23
      %s33 = scalar_select %p30, %s32, %s23
      %p34 = scmp.ge.s32.totalorder %s33, 2
      %s35 = scalar_select %p34, 0, %s33
      %s36 = sadd.s32 %s23, %s24
      %s37 = sadd.s32 %s35, %s31
      %s38 = ssub.s32 %s36, %s37
      %p39 = scmp.eq.s32.totalorder %s38, 0
      %s41 = sadd.s32 %s40, 1
      %s42 = scalar_select %p39, %s40, %s41
      %p45 = pneg %p39
      %p46 = scmp.eq.s32.totalorder %s16, 1
      %p47 = por %p45, %p46
      %p48 = scmp.ne.s32.totalorder %s40, %s43
      %p49 = scmp.eq.s32.totalorder %s16, 0
      %p50 = por %p48, %p49
      %p51 = scmp.ne.s32.totalorder %s40, %s43
      %p52 = scmp.eq.s32.totalorder %s21, 1
      %p53 = por %p51, %p52
      %p54 = scmp.ne.s32.totalorder %s43, %s44
      %p55 = scmp.eq.s32.totalorder %s21, 0
      %p56 = por %p54, %p55
      %p57 = scmp.ne.s32.totalorder %s43, %s44
      %p58 = scmp.eq.s32.totalorder %s22, 1
      %p59 = por %p57, %p58
      %p61 = scmp.ne.s32.totalorder %s44, %s60
      %p62 = scmp.eq.s32.totalorder %s22, 0
      %p63 = por %p61, %p62
      %s64 = sadd.s32 %s23, %s24
      %s65 = sadd.s32 %s35, %s31
      %s66 = ssub.s32 %s64, %s65
      %p67 = scmp.eq.s32.totalorder %s66, 0
      %s69 = sadd.s32 %s68, 1
      %s70 = scalar_select %p67, %s68, %s69
      %p73 = pneg %p67
      %p74 = scmp.eq.s32.totalorder %s16, 1
      %p75 = por %p73, %p74
      %p76 = scmp.ne.s32.totalorder %s68, %s71
      %p77 = scmp.eq.s32.totalorder %s16, 0
      %p78 = por %p76, %p77
      %p79 = scmp.ne.s32.totalorder %s68, %s71
      %p80 = scmp.eq.s32.totalorder %s21, 1
      %p81 = por %p79, %p80
      %p82 = scmp.ne.s32.totalorder %s71, %s72
      %p83 = scmp.eq.s32.totalorder %s21, 0
      %p84 = por %p82, %p83
      %p85 = scmp.ne.s32.totalorder %s71, %s72
      %p86 = scmp.eq.s32.totalorder %s22, 1
      %p87 = por %p85, %p86
      %p89 = scmp.ne.s32.totalorder %s72, %s88
      %p90 = scmp.eq.s32.totalorder %s22, 0
      %p91 = por %p89, %p90
      %s92 = ssub.s32 %s23, %s35
      %p93 = scmp.eq.s32.totalorder %s92, 0
      %s95 = sadd.s32 %s94, 1
      %s96 = scalar_select %p93, %s94, %s95
      %p99 = pneg %p93
      %p100 = scmp.eq.s32.totalorder %s16, 1
      %p101 = por %p99, %p100
      %p102 = scmp.ne.s32.totalorder %s94, %s97
      %p103 = scmp.eq.s32.totalorder %s16, 0
      %p104 = por %p102, %p103
      %p105 = scmp.ne.s32.totalorder %s94, %s97
      %p106 = scmp.eq.s32.totalorder %s21, 1
      %p107 = por %p105, %p106
      %p108 = scmp.ne.s32.totalorder %s97, %s98
      %p109 = scmp.eq.s32.totalorder %s21, 0
      %p110 = por %p108, %p109
      %p111 = scmp.ne.s32.totalorder %s97, %s98
      %p112 = scmp.eq.s32.totalorder %s22, 1
      %p113 = por %p111, %p112
      %p115 = scmp.ne.s32.totalorder %s98, %s114
      %p116 = scmp.eq.s32.totalorder %s22, 0
      %p117 = por %p115, %p116
      %s118 = ssub.s32 %s23, %s35
      %p119 = scmp.eq.s32.totalorder %s118, 0
      %s121 = sadd.s32 %s120, 1
      %s122 = scalar_select %p119, %s120, %s121
      %p125 = pneg %p119
      %p126 = scmp.eq.s32.totalorder %s16, 1
      %p127 = por %p125, %p126
      %p128 = scmp.ne.s32.totalorder %s120, %s123
      %p129 = scmp.eq.s32.totalorder %s16, 0
      %p130 = por %p128, %p129
      %p131 = scmp.ne.s32.totalorder %s120, %s123
      %p132 = scmp.eq.s32.totalorder %s21, 1
      %p133 = por %p131, %p132
      %p134 = scmp.ne.s32.totalorder %s123, %s124
      %p135 = scmp.eq.s32.totalorder %s21, 0
      %p136 = por %p134, %p135
      %p137 = scmp.ne.s32.totalorder %s123, %s124
      %p138 = scmp.eq.s32.totalorder %s22, 1
      %p139 = por %p137, %p138
      %p141 = scmp.ne.s32.totalorder %s124, %s140
      %p142 = scmp.eq.s32.totalorder %s22, 0
      %p143 = por %p141, %p142
      %p144 = scmp.le.s32.totalorder 1, %s16
      %p145 = scmp.lt.s32.totalorder %s16, 3
      %p146 = pnand %p144, %p145
      %p147 = pneg %p146
      // Predicated region
      $region9: #{tpu_custom_call.1} parent=5 // pred_check
        _
      $region10: #{tpu_custom_call.1} parent=5 // pred_check_branch
        %149 = sbr.rel (%p146) target = $region12
      $region11: #{tpu_custom_call.1} parent=5 // pred_region
        %s150 = ssub.s32 %s16, 1
      $region12: #{tpu_custom_call.1} parent=5 // pred_fallthru
        _
      %p151 = scmp.lt.s32.totalorder %s16, 2
      // Predicated region
      $region13: #{tpu_custom_call.1} parent=5 // pred_check
        %p152 = pneg %p151
      $region14: #{tpu_custom_call.1} parent=5 // pred_check_branch
        %154 = sbr.rel (%p152) target = $region16
      $region15: #{tpu_custom_call.1} parent=5 // pred_region
        // Predicated region
        $region17: #{tpu_custom_call.1} parent=15 // pred_check
          %p155 = pneg %p50
        $region18: #{tpu_custom_call.1} parent=15 // pred_check_branch
          %157 = sbr.rel (%p155) target = $region20
        $region19: #{tpu_custom_call.1} parent=15 // pred_region
          %s158 = sand.u32 %s40, 1
          %s159 = scalar_lea.sflag [#allocation5], %s158
          %s160 = sand.u32 %s40, 1
          %s161 = smul.addr %s160, 64
          %s162 = scalar_lea.vmem [#allocation4], %s161
          %s163 = sadd.s32 %s23, %s24
          %s164 = smul.u32 4, %s163
          %s166 = ssub.s32 1024, 1024
          %167 = vsyncadd %s159, %s166
          %s168 = smul.addr %s164, 2
          %s169 = smul.addr %s168, 128
          %s170 = scalar_lea.hbm %s0, %s169
          %s171 = sshll.u32 %s162, 4
          %s172 = int_to_ptr.vmem [resolvable:$true] %s171
          %177 = dma.hbm_to_vmem [thread:$0]  %s170, 1024, %s172, %s159, 128, 128, 8
        $region20: #{tpu_custom_call.1} parent=15 // pred_fallthru
          _
        // Predicated region
        $region21: #{tpu_custom_call.1} parent=15 // pred_check
          %p178 = pneg %p78
        $region22: #{tpu_custom_call.1} parent=15 // pred_check_branch
          %180 = sbr.rel (%p178) target = $region24
        $region23: #{tpu_custom_call.1} parent=15 // pred_region
          %s181 = sand.u32 %s68, 1
          %s182 = scalar_lea.sflag [#allocation7], %s181
          %s183 = sand.u32 %s68, 1
          %s184 = smul.addr %s183, 64
          %s185 = scalar_lea.vmem [#allocation6], %s184
          %s186 = sadd.s32 %s23, %s24
          %s187 = smul.u32 4, %s186
          %s189 = ssub.s32 1024, 1024
          %190 = vsyncadd %s182, %s189
          %s191 = smul.addr %s187, 2
          %s192 = smul.addr %s191, 128
          %s193 = scalar_lea.hbm %s1, %s192
          %s194 = sshll.u32 %s185, 4
          %s195 = int_to_ptr.vmem [resolvable:$true] %s194
          %200 = dma.hbm_to_vmem [thread:$0]  %s193, 1024, %s195, %s182, 128, 128, 8
        $region24: #{tpu_custom_call.1} parent=15 // pred_fallthru
          _
      $region16: #{tpu_custom_call.1} parent=5 // pred_fallthru
        _
      %p201 = scmp.le.s32.totalorder 1, %s16
      %p202 = scmp.lt.s32.totalorder %s16, 3
      %p203 = pnand %p201, %p202
      %p204 = pneg %p203
      // Predicated region
      $region25: #{tpu_custom_call.1} parent=5 // pred_check
        _
      $region26: #{tpu_custom_call.1} parent=5 // pred_check_branch
        %206 = sbr.rel (%p203) target = $region28
      $region27: #{tpu_custom_call.1} parent=5 // pred_region
        %s207 = ssub.s32 %s16, 1
        %s208 = sand.u32 %s43, 1
        %s209 = scalar_lea.sflag [#allocation5], %s208
        %s210 = sand.u32 %s43, 1
        %s211 = smul.addr %s210, 64
        %s212 = scalar_lea.vmem [#allocation4], %s211
        // Predicated region
        $region29: #{tpu_custom_call.1} parent=27 // pred_check
          %p213 = pneg %p56
        $region30: #{tpu_custom_call.1} parent=27 // pred_check_branch
          %215 = sbr.rel (%p213) target = $region32
        $region31: #{tpu_custom_call.1} parent=27 // pred_region
          %216 = dma.done %s209, 1024
        $region32: #{tpu_custom_call.1} parent=27 // pred_fallthru
          _
        %s217 = sand.u32 %s71, 1
        %s218 = scalar_lea.sflag [#allocation7], %s217
        %s219 = sand.u32 %s71, 1
        %s220 = smul.addr %s219, 64
        %s221 = scalar_lea.vmem [#allocation6], %s220
        // Predicated region
        $region33: #{tpu_custom_call.1} parent=27 // pred_check
          %p222 = pneg %p84
        $region34: #{tpu_custom_call.1} parent=27 // pred_check_branch
          %224 = sbr.rel (%p222) target = $region36
        $region35: #{tpu_custom_call.1} parent=27 // pred_region
          %225 = dma.done %s218, 1024
        $region36: #{tpu_custom_call.1} parent=27 // pred_fallthru
          _
        %s226 = sand.u32 %s43, 1
        %s227 = scalar_lea.sflag [#allocation5], %s226
        %s228 = sand.u32 %s43, 1
        %s229 = smul.addr %s228, 64
        %s230 = scalar_lea.vmem [#allocation4], %s229
        %p231 = pneg %p56
        %p232 = pneg %p53
        %s233 = sand.u32 %s71, 1
        %s234 = scalar_lea.sflag [#allocation7], %s233
        %s235 = sand.u32 %s71, 1
        %s236 = smul.addr %s235, 64
        %s237 = scalar_lea.vmem [#allocation6], %s236
        %p238 = pneg %p84
        %p239 = pneg %p81
        %p240 = pneg %p110
        %p241 = pneg %p107
        %p242 = scmp.lt.s32.totalorder %s25, 1
        %s243 = scalar_select %p242, %s25, 1
        %s244 = scalar_lea.vmem %s2, %s243
        %p245 = pneg %p136
        %p246 = pneg %p133
        %p247 = scmp.lt.s32.totalorder %s25, 1
        %s248 = scalar_select %p247, %s25, 1
        %s249 = scalar_lea.vmem %s3, %s248
        %s250 = sadd.s32 %s25, %s26
        %s251 = smul.u32 4, %s250
        %s252 = sadd.s32 %s25, %s26
        %s253 = smul.u32 4, %s252
        %p254 = scmp.lt.s32.totalorder %s25, 1
        %s255 = scalar_select %p254, %s25, 1
        %s256 = scalar_lea.vmem %s2, %s255
        %p257 = scmp.lt.s32.totalorder %s25, 1
        %s258 = scalar_select %p257, %s25, 1
        %s259 = scalar_lea.vmem %s3, %s258
        %p260 = scmp.eq.s32.totalorder %s26, 0
        // Predicated region
        $region37: #{tpu_custom_call.1} parent=27 // pred_check
          %p261 = pneg %p260
        $region38: #{tpu_custom_call.1} parent=27 // pred_check_branch
          %263 = sbr.rel (%p261) target = $region40
        $region39: #{tpu_custom_call.1} parent=27 // pred_region
          %vm264 = vcmask 121856
          %265 = vst.msk [vmem:[#allocation2] sm:$0xff] %vm264, 0.0
          %266 = vst.msk [vmem:[#allocation2 + $0x8] sm:$0xff] %vm264, 0.0
          %vm267 = vcmask 130048
          %268 = vst.msk [vmem:[#allocation3] sm:$0xff] %vm267, 0.0
          %vm269 = vcmask 129024
          %270 = vst.msk [vmem:[#allocation3 + $0x8] sm:$0x7f] %vm269, 0.0
        $region40: #{tpu_custom_call.1} parent=27 // pred_fallthru
          _
        %v271 = vld [vmem:[%s212] sm:$0xff]
        %v272 = vld [vmem:[%s212 + $0x8] sm:$0xff]
        %v273 = vld [vmem:[%s212 + $0x10] sm:$0xff]
        %v274 = vld [vmem:[%s212 + $0x18] sm:$0xff]
        %v275 = vld [vmem:[%s212 + $0x20] sm:$0xff]
        %v276 = vld [vmem:[%s212 + $0x28] sm:$0xff]
        %v277 = vld [vmem:[%s212 + $0x30] sm:$0xff]
        %v278 = vld [vmem:[%s212 + $0x38] sm:$0xff]
        %v279 = vld [vmem:[%s221] sm:$0xff]
        %v280 = vld [vmem:[%s221 + $0x8] sm:$0xff]
        %v281 = vld [vmem:[%s221 + $0x10] sm:$0xff]
        %v282 = vld [vmem:[%s221 + $0x18] sm:$0xff]
        %v283 = vld [vmem:[%s221 + $0x20] sm:$0xff]
        %v284 = vld [vmem:[%s221 + $0x28] sm:$0xff]
        %v285 = vld [vmem:[%s221 + $0x30] sm:$0xff]
        %v286 = vld [vmem:[%s221 + $0x38] sm:$0xff]
        %v287 = vsub.f32 %v271, %v279
        %v288 = vsub.f32 %v272, %v280
        %v289 = vsub.f32 %v273, %v281
        %v290 = vsub.f32 %v274, %v282
        %v291 = vsub.f32 %v275, %v283
        %v292 = vsub.f32 %v276, %v284
        %v293 = vsub.f32 %v277, %v285
        %v294 = vsub.f32 %v278, %v286
        %303 = vrot.lane.b32.xlu0 %v287, 1
        %v304 = vpop.permute.xlu0 %303
        %305 = vrot.lane.b32.xlu0 %v288, 1
        %v306 = vpop.permute.xlu0 %305
        %307 = vrot.lane.b32.xlu0 %v289, 1
        %v308 = vpop.permute.xlu0 %307
        %309 = vrot.lane.b32.xlu0 %v290, 1
        %v310 = vpop.permute.xlu0 %309
        %311 = vrot.lane.b32.xlu0 %v291, 1
        %v312 = vpop.permute.xlu0 %311
        %313 = vrot.lane.b32.xlu0 %v292, 1
        %v314 = vpop.permute.xlu0 %313
        %315 = vrot.lane.b32.xlu0 %v293, 1
        %v316 = vpop.permute.xlu0 %315
        %317 = vrot.lane.b32.xlu0 %v294, 1
        %v318 = vpop.permute.xlu0 %317
        %v327 = vsub.f32 %v287, %v304
        %v328 = vsub.f32 %v288, %v306
        %v329 = vsub.f32 %v289, %v308
        %v330 = vsub.f32 %v290, %v310
        %v331 = vsub.f32 %v291, %v312
        %v332 = vsub.f32 %v292, %v314
        %v333 = vsub.f32 %v293, %v316
        %v334 = vsub.f32 %v294, %v318
        %v335 = vand.u32 2147483647, %v327
        %v336 = vand.u32 2147483647, %v328
        %v337 = vand.u32 2147483647, %v329
        %v338 = vand.u32 2147483647, %v330
        %v339 = vand.u32 2147483647, %v331
        %v340 = vand.u32 2147483647, %v332
        %v341 = vand.u32 2147483647, %v333
        %v342 = vand.u32 2147483647, %v334
        %vm343 = vcmask 1040384
        %v344 = vrot.slane %v287, 7
        %v345 = vrot.slane %v288, 7
        %v346 = vsel %vm343, %v344, %v345
        %v347 = vrot.slane %v289, 7
        %v348 = vrot.slane %v290, 7
        %v349 = vsel %vm343, %v347, %v348
        %v350 = vrot.slane %v291, 7
        %v351 = vrot.slane %v292, 7
        %v352 = vsel %vm343, %v350, %v351
        %v353 = vrot.slane %v293, 7
        %v354 = vrot.slane %v294, 7
        %v355 = vsel %vm343, %v353, %v354
        %v364 = vsub.f32 %v287, %v344
        %v365 = vsub.f32 %v288, %v346
        %v366 = vsub.f32 %v289, %v347
        %v367 = vsub.f32 %v290, %v349
        %v368 = vsub.f32 %v291, %v350
        %v369 = vsub.f32 %v292, %v352
        %v370 = vsub.f32 %v293, %v353
        %v371 = vsub.f32 %v294, %v355
        %v372 = vand.u32 2147483647, %v364
        %v373 = vand.u32 2147483647, %v365
        %v374 = vand.u32 2147483647, %v366
        %v375 = vand.u32 2147483647, %v367
        %v376 = vand.u32 2147483647, %v368
        %v377 = vand.u32 2147483647, %v369
        %v378 = vand.u32 2147483647, %v370
        %v379 = vand.u32 2147483647, %v371
        %v380 = vld [vmem:[#allocation2] sm:$0xff]
        %v381 = vld [vmem:[#allocation2 + $0x8] sm:$0xff]
        %vm382 = vcmask 130056
        %v383 = vsel %vm382, %v335, 0.0
        %v384 = vsel %vm382, %v337, 0.0
        %v385 = vadd.f32 %v383, %v384
        %v386 = vsel %vm382, %v339, 0.0
        %v387 = vadd.f32 %v385, %v386
        %v388 = vsel %vm382, %v341, 0.0
        %v389 = vadd.f32 %v387, %v388
        %v390 = vsel %vm382, %v336, 0.0
        %v391 = vsel %vm382, %v338, 0.0
        %v392 = vadd.f32 %v390, %v391
        %v393 = vsel %vm382, %v340, 0.0
        %v394 = vadd.f32 %v392, %v393
        %v395 = vsel %vm382, %v342, 0.0
        %v396 = vadd.f32 %v394, %v395
        %399 = vrot.lane.b32.xlu0 %v389, 127
        %v400 = vpop.permute.xlu0 %399
        %401 = vrot.lane.b32.xlu0 %v396, 127
        %v402 = vpop.permute.xlu0 %401
        %v405 = vadd.f32 %v380, %v400
        %v406 = vadd.f32 %v381, %v402
        %vm407 = vcmask 121856
        %408 = vst.msk [vmem:[#allocation2] sm:$0xff] %vm407, %v405
        %409 = vst.msk [vmem:[#allocation2 + $0x8] sm:$0xff] %vm407, %v406
        %v410 = vld [vmem:[#allocation3] sm:$0xff]
        %v411 = vld [vmem:[#allocation3 + $0x8] sm:$0x7f]
        %vm412 = vcmask 130049
        %v413 = vsel %vm412, %v372, 0.0
        %v414 = vsel %vm412, %v374, 0.0
        %v415 = vadd.f32 %v413, %v414
        %v416 = vsel %vm412, %v376, 0.0
        %v417 = vadd.f32 %v415, %v416
        %v418 = vsel %vm412, %v378, 0.0
        %v419 = vadd.f32 %v417, %v418
        %vm420 = vcmask 130048
        %v421 = vsel %vm420, %v373, 0.0
        %v422 = vsel %vm420, %v375, 0.0
        %v423 = vadd.f32 %v421, %v422
        %v424 = vsel %vm420, %v377, 0.0
        %v425 = vadd.f32 %v423, %v424
        %v426 = vsel %vm420, %v379, 0.0
        %v427 = vadd.f32 %v425, %v426
        %vm430 = vcmask 1046528
        %v431 = vrot.slane %v419, 1
        %v432 = vrot.slane %v427, 1
        %v433 = vsel %vm430, %v431, %v432
        %v436 = vadd.f32 %v410, %v433
        %v437 = vadd.f32 %v411, %v432
        %438 = vst.msk [vmem:[#allocation3] sm:$0xff] %vm420, %v436
        %vm439 = vcmask 129024
        %440 = vst.msk [vmem:[#allocation3 + $0x8] sm:$0x7f] %vm439, %v437
        // Predicated region
        $region41: #{tpu_custom_call.1} parent=27 // pred_check
          %p441 = pneg %p260
        $region42: #{tpu_custom_call.1} parent=27 // pred_check_branch
          %443 = sbr.rel (%p441) target = $region44
        $region43: #{tpu_custom_call.1} parent=27 // pred_region
          %v444 = vld [vmem:[#allocation2] sm:$0xff]
          %v445 = vld [vmem:[#allocation2 + $0x8] sm:$0xff]
          %v446 = vsel %vm407, %v444, 0.0
          %v447 = vsel %vm407, %v445, 0.0
          %v448 = vadd.f32 %v446, %v447
          %449 = vadd.xlane.f32.xlu0 %v448
          %v450 = vpop.xlane.xlu0 %449
          %v451 = vrot.slane %v450, 4
          %v452 = vadd.f32 %v450, %v451
          %v453 = vrot.slane %v452, 2
          %v454 = vadd.f32 %v452, %v453
          %v455 = vrot.slane %v454, 1
          %v456 = vadd.f32 %v454, %v455
          %s457 = vtos %v456
          %v458 = vstv %s457
          %vm459 = vcmask 0
          %460 = vst.msk [vmem:[%s256] sm:$0x1] %vm459, %v458
          %v461 = vld [vmem:[#allocation3] sm:$0xff]
          %v462 = vld [vmem:[#allocation3 + $0x8] sm:$0x7f]
          %v463 = vsel %vm420, %v461, 0.0
          %v464 = vsel %vm439, %v462, 0.0
          %v465 = vadd.f32 %v463, %v464
          %466 = vadd.xlane.f32.xlu0 %v465
          %v467 = vpop.xlane.xlu0 %466
          %v468 = vrot.slane %v467, 4
          %v469 = vadd.f32 %v467, %v468
          %v470 = vrot.slane %v469, 2
          %v471 = vadd.f32 %v469, %v470
          %v472 = vrot.slane %v471, 1
          %v473 = vadd.f32 %v471, %v472
          %s474 = vtos %v473
          %v475 = vstv %s474
          %476 = vst.msk [vmem:[%s259] sm:$0x1] %vm459, %v475
        $region44: #{tpu_custom_call.1} parent=27 // pred_fallthru
          _
        %p477 = scmp.lt.s32.totalorder %s25, 1
        %s478 = scalar_select %p477, %s25, 1
        %s479 = scalar_lea.vmem %s2, %s478
        %p480 = scmp.lt.s32.totalorder %s25, 1
        %s481 = scalar_select %p480, %s25, 1
        %s482 = scalar_lea.vmem %s3, %s481
        // Predicated region
        $region45: #{tpu_custom_call.1} parent=27 // pred_check
          %p483 = pneg %p107
        $region46: #{tpu_custom_call.1} parent=27 // pred_check_branch
          %485 = sbr.rel (%p483) target = $region48
        $region47: #{tpu_custom_call.1} parent=27 // pred_region
          _
        $region48: #{tpu_custom_call.1} parent=27 // pred_fallthru
          _
        // Predicated region
        $region49: #{tpu_custom_call.1} parent=27 // pred_check
          %p486 = pneg %p133
        $region50: #{tpu_custom_call.1} parent=27 // pred_check_branch
          %488 = sbr.rel (%p486) target = $region52
        $region51: #{tpu_custom_call.1} parent=27 // pred_region
          _
        $region52: #{tpu_custom_call.1} parent=27 // pred_fallthru
          _
      $region28: #{tpu_custom_call.1} parent=5 // pred_fallthru
        _
      %p489 = scmp.le.s32.totalorder 2, %s16
      // Predicated region
      $region53: #{tpu_custom_call.1} parent=5 // pred_check
        %p490 = pneg %p489
      $region54: #{tpu_custom_call.1} parent=5 // pred_check_branch
        %492 = sbr.rel (%p490) target = $region56
      $region55: #{tpu_custom_call.1} parent=5 // pred_region
        %s493 = ssub.s32 %s16, 2
        // Predicated region
        $region57: #{tpu_custom_call.1} parent=55 // pred_check
          %p494 = pneg %p113
        $region58: #{tpu_custom_call.1} parent=55 // pred_check_branch
          %496 = sbr.rel (%p494) target = $region60
        $region59: #{tpu_custom_call.1} parent=55 // pred_region
          %p497 = scmp.lt.s32.totalorder %s27, 1
          %s498 = scalar_select %p497, %s27, 1
          %s499 = scalar_lea.vmem %s2, %s498
        $region60: #{tpu_custom_call.1} parent=55 // pred_fallthru
          _
        // Predicated region
        $region61: #{tpu_custom_call.1} parent=55 // pred_check
          %p500 = pneg %p139
        $region62: #{tpu_custom_call.1} parent=55 // pred_check_branch
          %502 = sbr.rel (%p500) target = $region64
        $region63: #{tpu_custom_call.1} parent=55 // pred_region
          %p503 = scmp.lt.s32.totalorder %s27, 1
          %s504 = scalar_select %p503, %s27, 1
          %s505 = scalar_lea.vmem %s3, %s504
        $region64: #{tpu_custom_call.1} parent=55 // pred_fallthru
          _
      $region56: #{tpu_custom_call.1} parent=5 // pred_fallthru
        _
    $region6: #{tpu_custom_call.1} parent=1 // loop_footer
      %s20 = sadd.s32 1, %s16
    $region7: #{tpu_custom_call.1} parent=1 // loop_footer_branch
      %15 = sbr.rel target = $region3
    $region8: #{tpu_custom_call.1} parent=1 // loop_exit
      _
    %506 = vsyncpa [#allocation5], 1
    %s507 = scalar_lea.sflag [#allocation5], 1
    %508 = vsyncpa %s507, 1
    %509 = vsyncpa [#allocation7], 1
    %s510 = scalar_lea.sflag [#allocation7], 1
    %511 = vsyncpa %s510, 1

</llo_original>
